<compile_context>
chip_gen: v7x
topology: tpu7x:2x2x1
jax: 0.10.0
libtpu: 0.0.40
codegen_flags: <defaults>
</compile_context>

<pallas_src>
import jax
import jax.numpy as jnp
from jax.experimental import pallas as pl
from jax.experimental.pallas import tpu as pltpu


def _gcn_cls_kernel(a_ref, x_ref, w_ref, b_ref, o_ref):
    # a_ref: (tile_n, n_pad)   x_ref: (n_pad, d_in)
    # w_ref: (d_in, d_out)     b_ref: (1, d_out)     o_ref: (tile_n, d_out)
    ax = jnp.dot(a_ref[...], x_ref[...], preferred_element_type=jnp.float32)
    z = jnp.dot(ax, w_ref[...], preferred_element_type=jnp.float32) + b_ref[...]
    # row-wise log-softmax over the class dimension (dim=1 of the node matrix)
    m = jnp.max(z, axis=-1, keepdims=True)
    z = z - m
    lse = jnp.log(jnp.sum(jnp.exp(z), axis=-1, keepdims=True))
    o_ref[...] = (z - lse).astype(o_ref.dtype)


def build_norm_adj(edge_index, num_nodes, *, improved=True, dtype=jnp.float32):
    """Dense D^{-1/2}(A + fill*I)D^{-1/2}, matching PyG gcn_norm semantics."""
    src = edge_index[0]
    dst = edge_index[1]
    a = jnp.zeros((num_nodes, num_nodes), dtype).at[dst, src].add(1.0)
    fill = 2.0 if improved else 1.0
    a = a + fill * jnp.eye(num_nodes, dtype=dtype)
    deg = jnp.sum(a, axis=1)
    d_inv_sqrt = jnp.where(deg > 0, jax.lax.rsqrt(deg), 0.0)
    return a * d_inv_sqrt[:, None] * d_inv_sqrt[None, :]


def gcn_cls_forward(x, edge_index, w, b, *, improved=True, tile_n=None):
    """x: (N, d_in), edge_index: (2, E) int, w: (d_in, d_out), b: (d_out,)."""
    n, d_in = x.shape
    d_out = w.shape[-1]
    itemsize = 4  # f32

    a_hat = build_norm_adj(edge_index, n, improved=improved, dtype=x.dtype)

    # ---- row-tile selection: fixed sublane-aligned tiles, many grid steps ----
    n_pad8 = max(8, -(-n // 8) * 8)
    if tile_n is None:
        target_bytes = 512 * 1024                     # ~0.5 MiB adjacency tile
        rows = max(8, target_bytes // max(1, n * itemsize))
        tile_n = min(max(8, (rows // 8) * 8), n_pad8)
    tile_n = max(8, (int(tile_n) // 8) * 8)           # sublane alignment
    tile_n = min(tile_n, n_pad8)
    n_pad = -(-n // tile_n) * tile_n
    grid = n_pad // tile_n

    if n_pad != n:
        a_hat = jnp.pad(a_hat, ((0, n_pad - n), (0, n_pad - n)))
        x_p = jnp.pad(x, ((0, n_pad - n), (0, 0)))
    else:
        x_p = x
    b2 = b.reshape(1, d_out).astype(jnp.float32)

    # ---- explicit VMEM budget: 2x double-buffered tiles + resident X/W/b ----
    per_step = (tile_n * n_pad + tile_n * d_out) * itemsize
    resident = (n_pad * d_in + d_in * d_out + d_out) * itemsize
    vmem_limit = int(min(max(16 << 20, 4 * per_step + 4 * resident + (1 << 20)),
                         64 << 20))

    cost = pl.CostEstimate(
        flops=2 * n_pad * n_pad * d_in + 2 * n_pad * d_in * d_out,
        transcendentals=n_pad * (d_out + 1),
        bytes_accessed=itemsize * (n_pad * n_pad + n_pad * d_in
                                   + d_in * d_out + d_out + n_pad * d_out),
    )

    out = pl.pallas_call(
        _gcn_cls_kernel,
        out_shape=jax.ShapeDtypeStruct((n_pad, d_out), x.dtype),
        grid_spec=pltpu.PrefetchScalarGridSpec(
            num_scalar_prefetch=0,
            grid=(grid,),
            in_specs=[
                pl.BlockSpec((tile_n, n_pad), lambda i: (i, 0)),   # A_hat row tile
                pl.BlockSpec((n_pad, d_in), lambda i: (0, 0)),     # X   (resident)
                pl.BlockSpec((d_in, d_out), lambda i: (0, 0)),     # W   (resident)
                pl.BlockSpec((1, d_out), lambda i: (0, 0)),        # b   (resident)
            ],
            out_specs=pl.BlockSpec((tile_n, d_out), lambda i: (i, 0)),
        ),
        compiler_params=pltpu.CompilerParams(
            dimension_semantics=("parallel",),
            vmem_limit_bytes=vmem_limit,
        ),
        cost_estimate=cost,
    )(a_hat, x_p, w, b2)

    return out[:n]


def _ref_cls(x, edge_index, w, b, improved=True):
    a_hat = build_norm_adj(edge_index, x.shape[0], improved=improved,
                           dtype=jnp.float32)
    z = a_hat @ (x @ w) + b
    return jax.nn.log_softmax(z, axis=1)


if __name__ == "__main__":
    # Small graph: 128 nodes, 32 input features, 8 classes.
    n_nodes, d_in, d_out = 128, 32, 8

    key = jax.random.PRNGKey(0)
    kx, kw, kb, ke = jax.random.split(key, 4)

    x = jax.random.normal(kx, (n_nodes, d_in), dtype=jnp.float32)

    # Ring graph (both directions) plus a few random chords (both directions).
    ring_src = jnp.arange(n_nodes, dtype=jnp.int32)
    ring_dst = (ring_src + 1) % n_nodes
    rnd = jax.random.randint(ke, (2, 32), 0, n_nodes, dtype=jnp.int32)
    src = jnp.concatenate([ring_src, ring_dst, rnd[0], rnd[1]])
    dst = jnp.concatenate([ring_dst, ring_src, rnd[1], rnd[0]])
    edge_index = jnp.stack([src, dst])

    # GCNConv parameters (glorot-style weight, small random bias).
    bound = (6.0 / (d_in + d_out)) ** 0.5
    w = jax.random.uniform(kw, (d_in, d_out), jnp.float32, -bound, bound)
    b = jax.random.uniform(kb, (d_out,), jnp.float32, -0.1, 0.1)

    # tile_n=32 -> grid of 4 steps: exercises pipelining + megacore sharding.
    out = gcn_cls_forward(x, edge_index, w, b, tile_n=32)
    out = jax.block_until_ready(out)

    ref = _ref_cls(x, edge_index, w, b)
    assert out.shape == (n_nodes, d_out)
    assert jnp.allclose(out, ref, atol=1e-4, rtol=1e-4)

    print("KERNEL_OK")
</pallas_src>

<mosaic_0001>
module attributes {stable_mosaic.version = 11 : i64} {
  func.func @_gcn_cls_kernel(%arg0: i32, %arg1: memref<32x128xf32, #tpu.memory_space<vmem>>, %arg2: memref<128x32xf32, #tpu.memory_space<vmem>>, %arg3: memref<32x8xf32, #tpu.memory_space<vmem>>, %arg4: memref<1x8xf32, #tpu.memory_space<vmem>>, %arg5: memref<32x8xf32, #tpu.memory_space<vmem>>) attributes {dimension_semantics = [#tpu.dimension_semantics<parallel>], iteration_bounds = array<i64: 4>, scalar_prefetch = 0 : i64, scratch_operands = 0 : i64, tpu.core_type = #tpu.core_type<tc>, window_params = [{transform_indices = @transform_0, window_bounds = array<i64: 32, 128>}, {pipeline_mode = #tpu.pipeline_mode<synchronous>, transform_indices = @transform_1, window_bounds = array<i64: 128, 32>}, {pipeline_mode = #tpu.pipeline_mode<synchronous>, transform_indices = @transform_2, window_bounds = array<i64: 32, 8>}, {pipeline_mode = #tpu.pipeline_mode<synchronous>, transform_indices = @transform_3, window_bounds = array<i64: 1, 8>}, {transform_indices = @transform_4, window_bounds = array<i64: 32, 8>}]} {
    %c0 = arith.constant 0 : index
    %c0_0 = arith.constant 0 : index
    %0 = vector.load %arg1[%c0, %c0_0] : memref<32x128xf32, #tpu.memory_space<vmem>>, vector<32x128xf32>
    %c0_1 = arith.constant 0 : index
    %c0_2 = arith.constant 0 : index
    %1 = vector.load %arg2[%c0_1, %c0_2] : memref<128x32xf32, #tpu.memory_space<vmem>>, vector<128x32xf32>
    %cst = arith.constant dense<0.000000e+00> : vector<32x32xf32>
    %2 = tpu.matmul %0, %1, %cst {dimension_numbers = #tpu.dot_dimension_numbers<[1], [0], [0], [1], [0, 0, 1, 1], [], []>} : vector<32x128xf32>, vector<128x32xf32>, vector<32x32xf32> -> vector<32x32xf32>
    %c0_3 = arith.constant 0 : index
    %c0_4 = arith.constant 0 : index
    %3 = vector.load %arg3[%c0_3, %c0_4] : memref<32x8xf32, #tpu.memory_space<vmem>>, vector<32x8xf32>
    %cst_5 = arith.constant dense<0.000000e+00> : vector<32x8xf32>
    %4 = tpu.matmul %2, %3, %cst_5 {dimension_numbers = #tpu.dot_dimension_numbers<[1], [0], [0], [1], [0, 0, 1, 1], [], []>} : vector<32x32xf32>, vector<32x8xf32>, vector<32x8xf32> -> vector<32x8xf32>
    %c0_6 = arith.constant 0 : index
    %c0_7 = arith.constant 0 : index
    %5 = vector.load %arg4[%c0_6, %c0_7] : memref<1x8xf32, #tpu.memory_space<vmem>>, vector<1x8xf32>
    %6 = vector.broadcast %5 : vector<1x8xf32> to vector<32x8xf32>
    %7 = arith.addf %4, %6 : vector<32x8xf32>
    %cst_8 = arith.constant dense<0xFF800000> : vector<32xf32>
    %8 = vector.multi_reduction <maximumf>, %7, %cst_8 [1] : vector<32x8xf32> to vector<32xf32>
    %9 = vector.shape_cast %8 : vector<32xf32> to vector<32x1xf32>
    %10 = vector.broadcast %9 : vector<32x1xf32> to vector<32x8xf32>
    %11 = arith.subf %7, %10 : vector<32x8xf32>
    %12 = math.exp %11 : vector<32x8xf32>
    %cst_9 = arith.constant dense<0.000000e+00> : vector<32xf32>
    %13 = vector.multi_reduction <add>, %12, %cst_9 [1] : vector<32x8xf32> to vector<32xf32>
    %14 = vector.shape_cast %13 : vector<32xf32> to vector<32x1xf32>
    %15 = math.log %14 : vector<32x1xf32>
    %16 = vector.broadcast %15 : vector<32x1xf32> to vector<32x8xf32>
    %17 = arith.subf %11, %16 : vector<32x8xf32>
    %c0_10 = arith.constant 0 : index
    %c0_11 = arith.constant 0 : index
    %18 = vector.load %arg5[%c0_10, %c0_11] : memref<32x8xf32, #tpu.memory_space<vmem>>, vector<32x8xf32>
    tpu.vector_store %arg5[%c0_10, %c0_11], %17 {strides = array<i32>} : memref<32x8xf32, #tpu.memory_space<vmem>>, vector<32x8xf32>,
    return
  }
  func.func @transform_0(%arg0: i32) -> (i32, i32) {
    %c0_i32 = arith.constant 0 : i32
    %c0_i32_0 = arith.constant 0 : i32
    return %arg0, %c0_i32 : i32, i32
  }
  func.func @transform_1(%arg0: i32) -> (i32, i32) {
    %c0_i32 = arith.constant 0 : i32
    %c0_i32_0 = arith.constant 0 : i32
    %c0_i32_1 = arith.constant 0 : i32
    return %c0_i32, %c0_i32_0 : i32, i32
  }
  func.func @transform_2(%arg0: i32) -> (i32, i32) {
    %c0_i32 = arith.constant 0 : i32
    %c0_i32_0 = arith.constant 0 : i32
    %c0_i32_1 = arith.constant 0 : i32
    return %c0_i32, %c0_i32_0 : i32, i32
  }
  func.func @transform_3(%arg0: i32) -> (i32, i32) {
    %c0_i32 = arith.constant 0 : i32
    %c0_i32_0 = arith.constant 0 : i32
    %c0_i32_1 = arith.constant 0 : i32
    return %c0_i32, %c0_i32_0 : i32, i32
  }
  func.func @transform_4(%arg0: i32) -> (i32, i32) {
    %c0_i32 = arith.constant 0 : i32
    %c0_i32_0 = arith.constant 0 : i32
    return %arg0, %c0_i32 : i32, i32
  }
}

</mosaic_0001>

<llo_original>
// kernel: tpu_custom_call.1
$region0: #{tpu_custom_call.1}
  #allocation0 [shape = 'u32[]', space=smem, size = 0x4, offset = 0x4, fixed_abs, tag = 'smem constant byte address 0x4 - core index']
  #allocation1 [shape = 'u32[144,128]{1,0:T(1,128)}', space=vmem, size = 0x12000, scoped, tag = 'internal scratch']
  %s0 = inlined_call_operand.vmem [shape: f32[128,128], index: 0, kind: input, shape index: {}]
  %s1 = inlined_call_operand.vmem [shape: f32[128,32], index: 1, kind: input, shape index: {}]
  %s2 = inlined_call_operand.vmem [shape: f32[32,8], index: 2, kind: input, shape index: {}]
  %s3 = inlined_call_operand.vmem [shape: f32[1,8], index: 3, kind: input, shape index: {}]
  %s4 = inlined_call_operand.vmem [shape: f32[128,8], index: 4, kind: output, shape index: {}]
  %s5 = sld [smem:[#allocation0]]
  $region49: #{tpu_custom_call.1} parent=0
    _
  %s7 = ssub.s32 1, %s5
  %s8 = scalar_select 0, %s7, %s5
  loop: start=0, step=1, limit=6
  $region2: #{tpu_custom_call.1} parent=0 // loop_pre_header
    _
  $region3: #{tpu_custom_call.1} parent=0 // loop_header
    %s10 = sphi 0, %s14
    %p11 = scmp.ge.s32.totalorder %s10, 6
    %s20 = sphi 0, %s22
    %s23 = sphi 0, %s20
    %s24 = sphi 0, %s23
    %s40 = sphi 0, %s24
    %s44 = sphi 0, %s44
    %s46 = sphi 0, %s44
    %s47 = sphi 0, %s46
    %s61 = sphi 0, %s47
    %s65 = sphi 0, %s65
    %s67 = sphi 0, %s65
    %s68 = sphi 0, %s67
    %s82 = sphi 0, %s68
    %s86 = sphi 0, %s86
    %s88 = sphi 0, %s86
    %s89 = sphi 0, %s88
    %s103 = sphi 0, %s89
    %s109 = sphi 0, %s111
    %s112 = sphi 0, %s109
    %s113 = sphi 0, %s112
    %s129 = sphi 0, %s113
  $region4: #{tpu_custom_call.1} parent=0 // loop_header_branch
    %13 = sbr.rel (%p11) target = $region8
  $region5: #{tpu_custom_call.1} parent=0 // loop_body
    %s15 = ssub.s32 %s10, 1
    %s16 = ssub.s32 %s10, 2
    %s17 = sadd.s32 %s10, 1
    %s18 = ssub.s32 %s10, %s17
    %p19 = scmp.eq.s32.totalorder %s18, 0
    %s21 = sadd.s32 %s20, 1
    %s22 = scalar_select %p19, %s20, %s21
    %p25 = pneg %p19
    %p26 = scmp.eq.s32.totalorder %s10, 3
    %p27 = por %p25, %p26
    %p28 = scmp.ne.s32.totalorder %s20, %s23
    %p29 = scmp.eq.s32.totalorder %s10, 0
    %p30 = por %p28, %p29
    %p31 = scmp.ne.s32.totalorder %s20, %s23
    %p32 = scmp.eq.s32.totalorder %s15, 3
    %p33 = por %p31, %p32
    %p34 = scmp.ne.s32.totalorder %s23, %s24
    %p35 = scmp.eq.s32.totalorder %s15, 0
    %p36 = por %p34, %p35
    %p37 = scmp.ne.s32.totalorder %s23, %s24
    %p38 = scmp.eq.s32.totalorder %s16, 3
    %p39 = por %p37, %p38
    %p41 = scmp.ne.s32.totalorder %s24, %s40
    %p42 = scmp.eq.s32.totalorder %s16, 0
    %p43 = por %p41, %p42
    %s45 = sadd.s32 %s44, 1
    %p48 = scmp.eq.s32.totalorder %s10, 3
    %p49 = scmp.ne.s32.totalorder %s44, %s46
    %p50 = scmp.eq.s32.totalorder %s10, 0
    %p51 = por %p49, %p50
    %p52 = scmp.ne.s32.totalorder %s44, %s46
    %p53 = scmp.eq.s32.totalorder %s15, 3
    %p54 = por %p52, %p53
    %p55 = scmp.ne.s32.totalorder %s46, %s47
    %p56 = scmp.eq.s32.totalorder %s15, 0
    %p57 = por %p55, %p56
    %p58 = scmp.ne.s32.totalorder %s46, %s47
    %p59 = scmp.eq.s32.totalorder %s16, 3
    %p60 = por %p58, %p59
    %p62 = scmp.ne.s32.totalorder %s47, %s61
    %p63 = scmp.eq.s32.totalorder %s16, 0
    %p64 = por %p62, %p63
    %s66 = sadd.s32 %s65, 1
    %p69 = scmp.eq.s32.totalorder %s10, 3
    %p70 = scmp.ne.s32.totalorder %s65, %s67
    %p71 = scmp.eq.s32.totalorder %s10, 0
    %p72 = por %p70, %p71
    %p73 = scmp.ne.s32.totalorder %s65, %s67
    %p74 = scmp.eq.s32.totalorder %s15, 3
    %p75 = por %p73, %p74
    %p76 = scmp.ne.s32.totalorder %s67, %s68
    %p77 = scmp.eq.s32.totalorder %s15, 0
    %p78 = por %p76, %p77
    %p79 = scmp.ne.s32.totalorder %s67, %s68
    %p80 = scmp.eq.s32.totalorder %s16, 3
    %p81 = por %p79, %p80
    %p83 = scmp.ne.s32.totalorder %s68, %s82
    %p84 = scmp.eq.s32.totalorder %s16, 0
    %p85 = por %p83, %p84
    %s87 = sadd.s32 %s86, 1
    %p90 = scmp.eq.s32.totalorder %s10, 3
    %p91 = scmp.ne.s32.totalorder %s86, %s88
    %p92 = scmp.eq.s32.totalorder %s10, 0
    %p93 = por %p91, %p92
    %p94 = scmp.ne.s32.totalorder %s86, %s88
    %p95 = scmp.eq.s32.totalorder %s15, 3
    %p96 = por %p94, %p95
    %p97 = scmp.ne.s32.totalorder %s88, %s89
    %p98 = scmp.eq.s32.totalorder %s15, 0
    %p99 = por %p97, %p98
    %p100 = scmp.ne.s32.totalorder %s88, %s89
    %p101 = scmp.eq.s32.totalorder %s16, 3
    %p102 = por %p100, %p101
    %p104 = scmp.ne.s32.totalorder %s89, %s103
    %p105 = scmp.eq.s32.totalorder %s16, 0
    %p106 = por %p104, %p105
    %s107 = ssub.s32 %s10, %s17
    %p108 = scmp.eq.s32.totalorder %s107, 0
    %s110 = sadd.s32 %s109, 1
    %s111 = scalar_select %p108, %s109, %s110
    %p114 = pneg %p108
    %p115 = scmp.eq.s32.totalorder %s10, 3
    %p116 = por %p114, %p115
    %p117 = scmp.ne.s32.totalorder %s109, %s112
    %p118 = scmp.eq.s32.totalorder %s10, 0
    %p119 = por %p117, %p118
    %p120 = scmp.ne.s32.totalorder %s109, %s112
    %p121 = scmp.eq.s32.totalorder %s15, 3
    %p122 = por %p120, %p121
    %p123 = scmp.ne.s32.totalorder %s112, %s113
    %p124 = scmp.eq.s32.totalorder %s15, 0
    %p125 = por %p123, %p124
    %p126 = scmp.ne.s32.totalorder %s112, %s113
    %p127 = scmp.eq.s32.totalorder %s16, 3
    %p128 = por %p126, %p127
    %p130 = scmp.ne.s32.totalorder %s113, %s129
    %p131 = scmp.eq.s32.totalorder %s16, 0
    %p132 = por %p130, %p131
    %p133 = scmp.le.s32.totalorder 1, %s10
    %p134 = scmp.lt.s32.totalorder %s10, 5
    %p135 = pnand %p133, %p134
    %p136 = pneg %p135
    // Predicated region
    $region9: #{tpu_custom_call.1} parent=5 // pred_check
      _
    $region10: #{tpu_custom_call.1} parent=5 // pred_check_branch
      %138 = sbr.rel (%p135) target = $region12
    $region11: #{tpu_custom_call.1} parent=5 // pred_region
      %s139 = ssub.s32 %s10, 1
      // Predicated region
      $region13: #{tpu_custom_call.1} parent=11 // pred_check
        %p140 = pneg %p57
      $region14: #{tpu_custom_call.1} parent=11 // pred_check_branch
        %142 = sbr.rel (%p140) target = $region16
      $region15: #{tpu_custom_call.1} parent=11 // pred_region
        _
      $region16: #{tpu_custom_call.1} parent=11 // pred_fallthru
        _
      // Predicated region
      $region17: #{tpu_custom_call.1} parent=11 // pred_check
        %p143 = pneg %p78
      $region18: #{tpu_custom_call.1} parent=11 // pred_check_branch
        %145 = sbr.rel (%p143) target = $region20
      $region19: #{tpu_custom_call.1} parent=11 // pred_region
        _
      $region20: #{tpu_custom_call.1} parent=11 // pred_fallthru
        _
      // Predicated region
      $region21: #{tpu_custom_call.1} parent=11 // pred_check
        %p146 = pneg %p99
      $region22: #{tpu_custom_call.1} parent=11 // pred_check_branch
        %148 = sbr.rel (%p146) target = $region24
      $region23: #{tpu_custom_call.1} parent=11 // pred_region
        _
      $region24: #{tpu_custom_call.1} parent=11 // pred_fallthru
        _
    $region12: #{tpu_custom_call.1} parent=5 // pred_fallthru
      _
    %p149 = scmp.lt.s32.totalorder %s10, 4
    // Predicated region
    $region25: #{tpu_custom_call.1} parent=5 // pred_check
      %p150 = pneg %p149
    $region26: #{tpu_custom_call.1} parent=5 // pred_check_branch
      %152 = sbr.rel (%p150) target = $region28
    $region27: #{tpu_custom_call.1} parent=5 // pred_region
      // Predicated region
      $region29: #{tpu_custom_call.1} parent=27 // pred_check
        %p153 = pneg %p30
      $region30: #{tpu_custom_call.1} parent=27 // pred_check_branch
        %155 = sbr.rel (%p153) target = $region32
      $region31: #{tpu_custom_call.1} parent=27 // pred_region
        %s156 = smul.u32 4, %s10
        %p157 = scmp.lt.s32.totalorder %s156, 15
        %s158 = scalar_select %p157, %s156, 15
        %s159 = smul.addr %s158, 8
        %s160 = scalar_lea.vmem %s0, %s159
        %s161 = smul.u32 4, %s10
      $region32: #{tpu_custom_call.1} parent=27 // pred_fallthru
        _
    $region28: #{tpu_custom_call.1} parent=5 // pred_fallthru
      _
    %p162 = scmp.le.s32.totalorder 1, %s10
    %p163 = scmp.lt.s32.totalorder %s10, 5
    %p164 = pnand %p162, %p163
    %p165 = pneg %p164
    // Predicated region
    $region33: #{tpu_custom_call.1} parent=5 // pred_check
      _
    $region34: #{tpu_custom_call.1} parent=5 // pred_check_branch
      %167 = sbr.rel (%p164) target = $region36
    $region35: #{tpu_custom_call.1} parent=5 // pred_region
      %s168 = ssub.s32 %s10, 1
      %s169 = smul.u32 4, %s15
      %p170 = scmp.lt.s32.totalorder %s169, 15
      %s171 = scalar_select %p170, %s169, 15
      %s172 = smul.addr %s171, 8
      %s173 = scalar_lea.vmem %s0, %s172
      %p174 = pneg %p36
      %p175 = pneg %p33
      %p176 = pneg %p57
      %p177 = pneg %p54
      %p178 = pneg %p78
      %p179 = pneg %p75
      %p180 = pneg %p99
      %p181 = pneg %p96
      %p182 = pneg %p125
      %p183 = pneg %p122
      %s184 = smul.u32 4, %s15
      %p185 = scmp.lt.s32.totalorder %s184, 15
      %s186 = scalar_select %p185, %s184, 15
      %s187 = smul.addr %s186, 8
      %s188 = scalar_lea.vmem %s4, %s187
      %s189 = smul.u32 4, %s15
      %p190 = scmp.lt.s32.totalorder %s189, 15
      %s191 = scalar_select %p190, %s189, 15
      %s192 = smul.addr %s191, 8
      %s193 = scalar_lea.vmem %s0, %s192
      %s194 = smul.u32 4, %s15
      %s195 = smul.u32 4, %s15
      %p196 = scmp.lt.s32.totalorder %s195, 15
      %s197 = scalar_select %p196, %s195, 15
      %s198 = smul.addr %s197, 8
      %s199 = scalar_lea.vmem %s4, %s198
      %s200 = smul.u32 4, %s15
      %v201 = vld [vmem:[%s193] sm:$0xff]
      %v202 = vld [vmem:[%s193 + $0x8] sm:$0xff]
      %v203 = vld [vmem:[%s193 + $0x10] sm:$0xff]
      %v204 = vld [vmem:[%s193 + $0x18] sm:$0xff]
      %v205 = vld [vmem:[%s1] sm:$0xff]
      %v206 = vld [vmem:[%s1 + $0x8] sm:$0xff]
      %v207 = vld [vmem:[%s1 + $0x10] sm:$0xff]
      %v208 = vld [vmem:[%s1 + $0x18] sm:$0xff]
      %v209 = vld [vmem:[%s1 + $0x20] sm:$0xff]
      %v210 = vld [vmem:[%s1 + $0x28] sm:$0xff]
      %v211 = vld [vmem:[%s1 + $0x30] sm:$0xff]
      %v212 = vld [vmem:[%s1 + $0x38] sm:$0xff]
      %v213 = vld [vmem:[%s1 + $0x40] sm:$0xff]
      %v214 = vld [vmem:[%s1 + $0x48] sm:$0xff]
      %v215 = vld [vmem:[%s1 + $0x50] sm:$0xff]
      %v216 = vld [vmem:[%s1 + $0x58] sm:$0xff]
      %v217 = vld [vmem:[%s1 + $0x60] sm:$0xff]
      %v218 = vld [vmem:[%s1 + $0x68] sm:$0xff]
      %v219 = vld [vmem:[%s1 + $0x70] sm:$0xff]
      %v220 = vld [vmem:[%s1 + $0x78] sm:$0xff]
      %221 = vmatprep.subr.mxu0 0.0
      %222 = vmatpush1.msra.mxu0 %v205
      %223 = vmatprep.subr.mxu0 0.0
      %224 = vmatpush1.msra.mxu0 %v206
      %225 = vmatprep.subr.mxu0 0.0
      %226 = vmatpush1.msra.mxu0 %v207
      %227 = vmatprep.subr.mxu0 0.0
      %228 = vmatpush1.msra.mxu0 %v208
      %229 = vmatprep.subr.mxu0 0.0
      %230 = vmatpush1.msra.mxu0 %v209
      %231 = vmatprep.subr.mxu0 0.0
      %232 = vmatpush1.msra.mxu0 %v210
      %233 = vmatprep.subr.mxu0 0.0
      %234 = vmatpush1.msra.mxu0 %v211
      %235 = vmatprep.subr.mxu0 0.0
      %236 = vmatpush1.msra.mxu0 %v212
      %237 = vmatprep.subr.mxu0 0.0
      %238 = vmatpush1.msra.mxu0 %v213
      %239 = vmatprep.subr.mxu0 0.0
      %240 = vmatpush1.msra.mxu0 %v214
      %241 = vmatprep.subr.mxu0 0.0
      %242 = vmatpush1.msra.mxu0 %v215
      %243 = vmatprep.subr.mxu0 0.0
      %244 = vmatpush1.msra.mxu0 %v216
      %245 = vmatprep.subr.mxu0 0.0
      %246 = vmatpush1.msra.mxu0 %v217
      %247 = vmatprep.subr.mxu0 0.0
      %248 = vmatpush1.msra.mxu0 %v218
      %249 = vmatprep.subr.mxu0 0.0
      %250 = vmatpush1.msra.mxu0 %v219
      %251 = vmatprep.subr.mxu0 0.0
      %252 = vmatpush1.msra.mxu0 %v220
      %253 = vmatprep.subr.mxu0 0.0
      %254 = vmatpush1.msra.mxu0 0.0
      %255 = vmatprep.subr.mxu0 0.0
      %256 = vmatpush1.msra.mxu0 0.0
      %257 = vmatprep.subr.mxu0 0.0
      %258 = vmatpush1.msra.mxu0 0.0
      %259 = vmatprep.subr.mxu0 0.0
      %260 = vmatpush1.msra.mxu0 0.0
      %261 = vmatprep.subr.mxu0 0.0
      %262 = vmatpush1.msra.mxu0 0.0
      %263 = vmatprep.subr.mxu0 0.0
      %264 = vmatpush1.msra.mxu0 0.0
      %265 = vmatprep.subr.mxu0 0.0
      %266 = vmatpush1.msra.mxu0 0.0
      %267 = vmatprep.subr.mxu0 0.0
      %268 = vmatpush1.msra.mxu0 0.0
      %269 = vmatprep.subr.mxu0 0.0
      %270 = vmatpush1.msra.mxu0 0.0
      %271 = vmatprep.subr.mxu0 0.0
      %272 = vmatpush1.msra.mxu0 0.0
      %273 = vmatprep.subr.mxu0 0.0
      %274 = vmatpush1.msra.mxu0 0.0
      %275 = vmatprep.subr.mxu0 0.0
      %276 = vmatpush1.msra.mxu0 0.0
      %277 = vmatprep.subr.mxu0 0.0
      %278 = vmatpush1.msra.mxu0 0.0
      %279 = vmatprep.subr.mxu0 0.0
      %280 = vmatpush1.msra.mxu0 0.0
      %281 = vmatprep.subr.mxu0 0.0
      %282 = vmatpush1.msra.mxu0 0.0
      %283 = vmatprep.subr.mxu0 0.0
      %284 = vmatpush1.msra.mxu0 0.0
      %285 = vmatprep.mubr.f32.mxu0 0.0
      %286 = vmatmul.mubr.f32.gmra.mrb[0].mxu0 %v201
      %v287 = vpop.f32.mrb[0].mxu0
      %v288 = vadd.f32 0.0, %v287
      %v289 = vpop.f32.mrb[0].mxu0
      %290 = vmatprep.mubr.f32.mxu0 0.0
      %291 = vmatmul.mubr.f32.gmra.mrb[0].mxu0 %v202
      %v292 = vpop.f32.mrb[0].mxu0
      %v293 = vadd.f32 0.0, %v292
      %v294 = vpop.f32.mrb[0].mxu0
      %295 = vmatprep.mubr.f32.mxu0 0.0
      %296 = vmatmul.mubr.f32.gmra.mrb[0].mxu0 %v203
      %v297 = vpop.f32.mrb[0].mxu0
      %v298 = vadd.f32 0.0, %v297
      %v299 = vpop.f32.mrb[0].mxu0
      %300 = vmatprep.mubr.f32.mxu0 0.0
      %301 = vmatmul.mubr.f32.gmra.mrb[0].mxu0 %v204
      %v302 = vpop.f32.mrb[0].mxu0
      %v303 = vadd.f32 0.0, %v302
      %v304 = vpop.f32.mrb[0].mxu0
      %305 = vdwg.mxu0
      %v306 = vld [vmem:[%s2] sm:$0xff]
      %v307 = vld [vmem:[%s2 + $0x8] sm:$0xff]
      %v308 = vld [vmem:[%s2 + $0x10] sm:$0xff]
      %v309 = vld [vmem:[%s2 + $0x18] sm:$0xff]
      %v310 = vld [vmem:[%s3] sm:$0x1]
      %v312 = vlaneseq
      %v313 = vshrl.u32 %v312, 7
      %v314 = vsub.s32 0, %v313
      %v315 = vrot.slane %v310, %v314
      %vm317 = vcmask 261120
      %v319 = vsel %vm317, %v288, 0
      %v322 = vsel %vm317, %v293, 0
      %v325 = vsel %vm317, %v298, 0
      %v328 = vsel %vm317, %v303, 0
      %330 = vmatprep.subr.mxu0 0.0
      %331 = vmatpush1.msra.mxu0 %v306
      %332 = vmatprep.subr.mxu0 0.0
      %333 = vmatpush1.msra.mxu0 %v307
      %334 = vmatprep.subr.mxu0 0.0
      %335 = vmatpush1.msra.mxu0 %v308
      %336 = vmatprep.subr.mxu0 0.0
      %337 = vmatpush1.msra.mxu0 %v309
      %338 = vmatprep.subr.mxu0 0.0
      %339 = vmatpush1.msra.mxu0 0.0
      %340 = vmatprep.subr.mxu0 0.0
      %341 = vmatpush1.msra.mxu0 0.0
      %342 = vmatprep.subr.mxu0 0.0
      %343 = vmatpush1.msra.mxu0 0.0
      %344 = vmatprep.subr.mxu0 0.0
      %345 = vmatpush1.msra.mxu0 0.0
      %346 = vmatprep.subr.mxu0 0.0
      %347 = vmatpush1.msra.mxu0 0.0
      %348 = vmatprep.subr.mxu0 0.0
      %349 = vmatpush1.msra.mxu0 0.0
      %350 = vmatprep.subr.mxu0 0.0
      %351 = vmatpush1.msra.mxu0 0.0
      %352 = vmatprep.subr.mxu0 0.0
      %353 = vmatpush1.msra.mxu0 0.0
      %354 = vmatprep.subr.mxu0 0.0
      %355 = vmatpush1.msra.mxu0 0.0
      %356 = vmatprep.subr.mxu0 0.0
      %357 = vmatpush1.msra.mxu0 0.0
      %358 = vmatprep.subr.mxu0 0.0
      %359 = vmatpush1.msra.mxu0 0.0
      %360 = vmatprep.subr.mxu0 0.0
      %361 = vmatpush1.msra.mxu0 0.0
      %362 = vmatprep.subr.mxu0 0.0
      %363 = vmatpush1.msra.mxu0 0.0
      %364 = vmatprep.subr.mxu0 0.0
      %365 = vmatpush1.msra.mxu0 0.0
      %366 = vmatprep.subr.mxu0 0.0
      %367 = vmatpush1.msra.mxu0 0.0
      %368 = vmatprep.subr.mxu0 0.0
      %369 = vmatpush1.msra.mxu0 0.0
      %370 = vmatprep.subr.mxu0 0.0
      %371 = vmatpush1.msra.mxu0 0.0
      %372 = vmatprep.subr.mxu0 0.0
      %373 = vmatpush1.msra.mxu0 0.0
      %374 = vmatprep.subr.mxu0 0.0
      %375 = vmatpush1.msra.mxu0 0.0
      %376 = vmatprep.subr.mxu0 0.0
      %377 = vmatpush1.msra.mxu0 0.0
      %378 = vmatprep.subr.mxu0 0.0
      %379 = vmatpush1.msra.mxu0 0.0
      %380 = vmatprep.subr.mxu0 0.0
      %381 = vmatpush1.msra.mxu0 0.0
      %382 = vmatprep.subr.mxu0 0.0
      %383 = vmatpush1.msra.mxu0 0.0
      %384 = vmatprep.subr.mxu0 0.0
      %385 = vmatpush1.msra.mxu0 0.0
      %386 = vmatprep.subr.mxu0 0.0
      %387 = vmatpush1.msra.mxu0 0.0
      %388 = vmatprep.subr.mxu0 0.0
      %389 = vmatpush1.msra.mxu0 0.0
      %390 = vmatprep.subr.mxu0 0.0
      %391 = vmatpush1.msra.mxu0 0.0
      %392 = vmatprep.subr.mxu0 0.0
      %393 = vmatpush1.msra.mxu0 0.0
      %394 = vmatprep.mubr.f32.mxu0 0.0
      %395 = vmatmul.mubr.f32.gmra.mrb[0].mxu0 %v319
      %v396 = vpop.f32.mrb[0].mxu0
      %v397 = vadd.f32 %v315, %v396
      %v398 = vpop.f32.mrb[0].mxu0
      %399 = vmatprep.mubr.f32.mxu0 0.0
      %400 = vmatmul.mubr.f32.gmra.mrb[0].mxu0 %v322
      %v401 = vpop.f32.mrb[0].mxu0
      %v402 = vadd.f32 %v315, %v401
      %v403 = vpop.f32.mrb[0].mxu0
      %404 = vmatprep.mubr.f32.mxu0 0.0
      %405 = vmatmul.mubr.f32.gmra.mrb[0].mxu0 %v325
      %v406 = vpop.f32.mrb[0].mxu0
      %v407 = vadd.f32 %v315, %v406
      %v408 = vpop.f32.mrb[0].mxu0
      %409 = vmatprep.mubr.f32.mxu0 0.0
      %410 = vmatmul.mubr.f32.gmra.mrb[0].mxu0 %v328
      %v411 = vpop.f32.mrb[0].mxu0
      %v412 = vadd.f32 %v315, %v411
      %v413 = vpop.f32.mrb[0].mxu0
      %414 = vdwg.mxu0
      %vm415 = vcmask 64512
      %v416 = vsel %vm415, %v397, -inf
      %417 = vmax.xlane.f32.xlu0 %v416
      %v418 = vpop.xlane.xlu0 %417
      %v419 = vsel %vm415, %v402, -inf
      %420 = vmax.xlane.f32.xlu0 %v419
      %v421 = vpop.xlane.xlu0 %420
      %v422 = vsel %vm415, %v407, -inf
      %423 = vmax.xlane.f32.xlu0 %v422
      %v424 = vpop.xlane.xlu0 %423
      %v425 = vsel %vm415, %v412, -inf
      %426 = vmax.xlane.f32.xlu0 %v425
      %v427 = vpop.xlane.xlu0 %426
      %v428 = vsub.f32 %v397, %v418
      %v429 = vsub.f32 %v402, %v421
      %v430 = vsub.f32 %v407, %v424
      %v431 = vsub.f32 %v412, %v427
      %v432 = vmul.f32 %v428, 1.442695
      %v433 = vpow.pop %v432
      %v434 = vmul.f32 %v429, 1.442695
      %v435 = vpow.pop %v434
      %v436 = vmul.f32 %v430, 1.442695
      %v437 = vpow.pop %v436
      %v438 = vmul.f32 %v431, 1.442695
      %v439 = vpow.pop %v438
      %v440 = vsel %vm415, %v433, 0.0
      %441 = vadd.xlane.f32.xlu0 %v440
      %v442 = vpop.xlane.xlu0 %441
      %v443 = vsel %vm415, %v435, 0.0
      %444 = vadd.xlane.f32.xlu0 %v443
      %v445 = vpop.xlane.xlu0 %444
      %v446 = vsel %vm415, %v437, 0.0
      %447 = vadd.xlane.f32.xlu0 %v446
      %v448 = vpop.xlane.xlu0 %447
      %v449 = vsel %vm415, %v439, 0.0
      %450 = vadd.xlane.f32.xlu0 %v449
      %v451 = vpop.xlane.xlu0 %450
      %v452 = vlog2.pop %v442
      %v453 = vmul.f32 %v452, 0.6931472
      %v454 = vlog2.pop %v445
      %v455 = vmul.f32 %v454, 0.6931472
      %v456 = vlog2.pop %v448
      %v457 = vmul.f32 %v456, 0.6931472
      %v458 = vlog2.pop %v451
      %v459 = vmul.f32 %v458, 0.6931472
      %v460 = vsub.f32 %v428, %v453
      %v461 = vsub.f32 %v429, %v455
      %v462 = vsub.f32 %v430, %v457
      %v463 = vsub.f32 %v431, %v459
      %464 = vst.msk [vmem:[%s199] sm:$0xff] %vm415, %v460
      %465 = vst.msk [vmem:[%s199 + $0x8] sm:$0xff] %vm415, %v461
      %466 = vst.msk [vmem:[%s199 + $0x10] sm:$0xff] %vm415, %v462
      %467 = vst.msk [vmem:[%s199 + $0x18] sm:$0xff] %vm415, %v463
      %s468 = smul.u32 4, %s15
      %p469 = scmp.lt.s32.totalorder %s468, 15
      %s470 = scalar_select %p469, %s468, 15
      %s471 = smul.addr %s470, 8
      %s472 = scalar_lea.vmem %s4, %s471
      // Predicated region
      $region37: #{tpu_custom_call.1} parent=35 // pred_check
        %p473 = pneg %p122
      $region38: #{tpu_custom_call.1} parent=35 // pred_check_branch
        %475 = sbr.rel (%p473) target = $region40
      $region39: #{tpu_custom_call.1} parent=35 // pred_region
        %s476 = smul.u32 4, %s15
      $region40: #{tpu_custom_call.1} parent=35 // pred_fallthru
        _
    $region36: #{tpu_custom_call.1} parent=5 // pred_fallthru
      _
    %p477 = scmp.le.s32.totalorder 2, %s10
    // Predicated region
    $region41: #{tpu_custom_call.1} parent=5 // pred_check
      %p478 = pneg %p477
    $region42: #{tpu_custom_call.1} parent=5 // pred_check_branch
      %480 = sbr.rel (%p478) target = $region44
    $region43: #{tpu_custom_call.1} parent=5 // pred_region
      %s481 = ssub.s32 %s10, 2
      // Predicated region
      $region45: #{tpu_custom_call.1} parent=43 // pred_check
        %p482 = pneg %p128
      $region46: #{tpu_custom_call.1} parent=43 // pred_check_branch
        %484 = sbr.rel (%p482) target = $region48
      $region47: #{tpu_custom_call.1} parent=43 // pred_region
        %s485 = smul.u32 4, %s16
        %p486 = scmp.lt.s32.totalorder %s485, 15
        %s487 = scalar_select %p486, %s485, 15
        %s488 = smul.addr %s487, 8
        %s489 = scalar_lea.vmem %s4, %s488
      $region48: #{tpu_custom_call.1} parent=43 // pred_fallthru
        _
    $region44: #{tpu_custom_call.1} parent=5 // pred_fallthru
      _
  $region6: #{tpu_custom_call.1} parent=0 // loop_footer
    %s14 = sadd.s32 1, %s10
  $region7: #{tpu_custom_call.1} parent=0 // loop_footer_branch
    %9 = sbr.rel target = $region3
  $region8: #{tpu_custom_call.1} parent=0 // loop_exit
    _

</llo_original>
